<compile_context>
chip_gen: v7x
topology: tpu7x:2x2x1
jax: 0.10.0
libtpu: 0.0.40
codegen_flags: <defaults>
</compile_context>

<pallas_src>
import jax
import jax.numpy as jnp
from jax import lax
from jax.experimental import pallas as pl
from jax.experimental.pallas import tpu as pltpu


def lstm_predictor_kernel(x_ref, lstm_ref, reg_ref, y_ref):
    S, I = x_ref.shape
    G = lstm_ref.shape[1]          # 4 * H
    H = G // 4
    O = y_ref.shape[1]

    # ---- Unpack the packed parameter slab (static sublane slices, once).
    wih = lstm_ref[0:I, :]                      # (I, 4H)
    whh = lstm_ref[I:I + H, :]                  # (H, 4H)
    b = lstm_ref[I + H:I + H + 1, :]            # (1, 4H)  (b_ih + b_hh)

    # ---- Hoisted input projection (one batched MXU pass, bias folded in once).
    xw = jnp.dot(x_ref[...], wih, preferred_element_type=jnp.float32) + b   # (S, 4H)
    xw_rows = [xw[t:t + 1, :] for t in range(S)]    # pre-split, off the serial chain

    # Lane mask / scale built once: g (tanh) lanes get scale 1.0, i/f/o lanes 0.5 so that
    # a single tanh pass yields sigmoid via 0.5*(tanh(x/2)+1).
    lane = lax.broadcasted_iota(jnp.int32, (1, G), 1)
    g_mask = (lane >= 2 * H) & (lane < 3 * H)
    lane_scale = jnp.where(g_mask, jnp.float32(1.0), jnp.float32(0.5))       # (1, 4H)

    h = jnp.zeros((1, H), jnp.float32)
    c = jnp.zeros((1, H), jnp.float32)
    hs_rows = []

    # ---- Fully unrolled recurrence: per step one (1,H)x(H,4H) dot, ONE full-vreg tanh
    #      over the gates, one tanh(c), a select and a few VPU elementwise ops.
    for t in range(S):
        gates = xw_rows[t] + jnp.dot(h, whh,
                                     preferred_element_type=jnp.float32)    # (1, 4H)
        th = jnp.tanh(gates * lane_scale)            # single EUP pass over all gates
        act = jnp.where(g_mask, th, 0.5 * th + 0.5)  # activated [i | f | g | o]
        i_g = act[:, 0 * H:1 * H]
        f_g = act[:, 1 * H:2 * H]
        g_g = act[:, 2 * H:3 * H]
        o_g = act[:, 3 * H:4 * H]
        c = f_g * c + i_g * g_g
        h = o_g * jnp.tanh(c)
        hs_rows.append(h)                            # register-resident, no VMEM store

    hs = jnp.concatenate(hs_rows, axis=0)            # (S, H) -- one vreg at these sizes

    # ---- Output projection.
    if O == 1:
        # VPU mul + XLU lane reduce: no MXU round trip for an (S,H)x(H,1) matvec.
        w_row = reg_ref[0:1, :]                      # (1, H)
        b_val = reg_ref[1:2, 0:1]                    # (1, 1)
        y = jnp.sum(hs * w_row, axis=-1, keepdims=True) + b_val             # (S, 1)
    else:
        wreg = reg_ref[0:H, :]                       # (H, O)
        breg = reg_ref[H:H + 1, :]                   # (1, O)
        y = jnp.dot(hs, wreg, preferred_element_type=jnp.float32) + breg    # (S, O)

    y_ref[...] = y.astype(y_ref.dtype)


def lstm_predictor_forward(x, params):
    """x: (S, I) float32 -> (S, 1, O) float32 (matches PyTorch LSTMPredictor.forward)."""
    S, _ = x.shape
    H = params["w_hh"].shape[1]
    O = params["w_reg"].shape[0]

    # Pack the 6 tiny operands into 2 slabs -> 3 input DMAs total (incl. x).
    lstm_slab = jnp.concatenate(
        [params["w_ih"].T,                                  # (I, 4H)
         params["w_hh"].T,                                  # (H, 4H)
         (params["b_ih"] + params["b_hh"])[None, :]],       # (1, 4H)
        axis=0).astype(jnp.float32)                         # (I+H+1, 4H)

    if O == 1:
        reg_slab = jnp.concatenate(
            [params["w_reg"],                                          # (1, H)
             jnp.broadcast_to(params["b_reg"][:, None], (1, H))],      # (1, H)
            axis=0).astype(jnp.float32)                                # (2, H)
    else:
        reg_slab = jnp.concatenate(
            [params["w_reg"].T, params["b_reg"][None, :]],
            axis=0).astype(jnp.float32)                                # (H+1, O)

    # Single-sequence, latency-bound, ~20 KiB footprint: gridless whole-array-in-VMEM.
    # (For batched use on v7x, add a leading batch grid axis with
    #  dimension_semantics=("parallel", ...) to engage the second TensorCore.)
    y = pl.pallas_call(
        lstm_predictor_kernel,
        out_shape=jax.ShapeDtypeStruct((S, O), jnp.float32),
        in_specs=[pl.BlockSpec(memory_space=pltpu.MemorySpace.VMEM)] * 3,
        out_specs=pl.BlockSpec(memory_space=pltpu.MemorySpace.VMEM),
    )(x, lstm_slab, reg_slab)
    return y.reshape(S, 1, O)


def lstm_predictor_reference(x, params):
    """Pure-JAX reference of the PyTorch forward, for verification."""
    H = params["w_hh"].shape[1]

    def step(carry, x_t):
        h, c = carry
        gates = (
            x_t @ params["w_ih"].T + params["b_ih"]
            + h @ params["w_hh"].T + params["b_hh"]
        )
        i_g = jax.nn.sigmoid(gates[0 * H:1 * H])
        f_g = jax.nn.sigmoid(gates[1 * H:2 * H])
        g_g = jnp.tanh(gates[2 * H:3 * H])
        o_g = jax.nn.sigmoid(gates[3 * H:4 * H])
        c_new = f_g * c + i_g * g_g
        h_new = o_g * jnp.tanh(c_new)
        return (h_new, c_new), h_new

    init = (jnp.zeros((H,), jnp.float32), jnp.zeros((H,), jnp.float32))
    _, hs = lax.scan(step, init, x)                    # (S, H)
    y = hs @ params["w_reg"].T + params["b_reg"]       # (S, O)
    return y[:, None, :]


def init_params(key, input_size, hidden_size, output_size):
    # PyTorch default init: U(-1/sqrt(H), 1/sqrt(H)) for LSTM, U(-1/sqrt(fan_in), ..) for Linear.
    k = 1.0 / jnp.sqrt(hidden_size)
    keys = jax.random.split(key, 6)
    p = {
        "w_ih": jax.random.uniform(keys[0], (4 * hidden_size, input_size), jnp.float32, -k, k),
        "w_hh": jax.random.uniform(keys[1], (4 * hidden_size, hidden_size), jnp.float32, -k, k),
        "b_ih": jax.random.uniform(keys[2], (4 * hidden_size,), jnp.float32, -k, k),
        "b_hh": jax.random.uniform(keys[3], (4 * hidden_size,), jnp.float32, -k, k),
        "w_reg": jax.random.uniform(keys[4], (output_size, hidden_size), jnp.float32, -k, k),
        "b_reg": jax.random.uniform(keys[5], (output_size,), jnp.float32, -k, k),
    }
    return p


if __name__ == "__main__":
    SEQ, INPUT, HIDDEN, OUTPUT = 8, 8, 32, 1

    key = jax.random.PRNGKey(0)
    k_x, k_p = jax.random.split(key)
    x = jax.random.normal(k_x, (SEQ, INPUT), jnp.float32)   # seq of length 8, input_size 8
    params = init_params(k_p, INPUT, HIDDEN, OUTPUT)

    out = lstm_predictor_forward(x, params)
    out = jax.block_until_ready(out)

    ref = jax.block_until_ready(lstm_predictor_reference(x, params))
    assert out.shape == (SEQ, 1, OUTPUT), out.shape
    assert jnp.allclose(out, ref, atol=1e-5, rtol=1e-5), float(jnp.max(jnp.abs(out - ref)))

    print("KERNEL_OK")
</pallas_src>

<mosaic_0001>
module attributes {stable_mosaic.version = 11 : i64} {
  func.func @lstm_predictor_kernel(%arg0: memref<8x8xf32, #tpu.memory_space<vmem>>, %arg1: memref<41x128xf32, #tpu.memory_space<vmem>>, %arg2: memref<2x32xf32, #tpu.memory_space<vmem>>, %arg3: memref<8x1xf32, #tpu.memory_space<vmem>>) attributes {dimension_semantics = [], scalar_prefetch = 0 : i64, scratch_operands = 0 : i64, tpu.core_type = #tpu.core_type<tc>} {
    %c0 = arith.constant 0 : index
    %c0_0 = arith.constant 0 : index
    %0 = vector.load %arg1[%c0, %c0_0] : memref<41x128xf32, #tpu.memory_space<vmem>>, vector<8x128xf32>
    %c8 = arith.constant 8 : index
    %c0_1 = arith.constant 0 : index
    %1 = vector.load %arg1[%c8, %c0_1] : memref<41x128xf32, #tpu.memory_space<vmem>>, vector<32x128xf32>
    %c40 = arith.constant 40 : index
    %c0_2 = arith.constant 0 : index
    %2 = vector.load %arg1[%c40, %c0_2] : memref<41x128xf32, #tpu.memory_space<vmem>>, vector<1x128xf32>
    %c0_3 = arith.constant 0 : index
    %c0_4 = arith.constant 0 : index
    %3 = vector.load %arg0[%c0_3, %c0_4] : memref<8x8xf32, #tpu.memory_space<vmem>>, vector<8x8xf32>
    %cst = arith.constant dense<0.000000e+00> : vector<8x128xf32>
    %4 = tpu.matmul %3, %0, %cst {dimension_numbers = #tpu.dot_dimension_numbers<[1], [0], [0], [1], [0, 0, 1, 1], [], []>} : vector<8x8xf32>, vector<8x128xf32>, vector<8x128xf32> -> vector<8x128xf32>
    %5 = vector.broadcast %2 : vector<1x128xf32> to vector<8x128xf32>
    %6 = arith.addf %4, %5 : vector<8x128xf32>
    %7 = vector.extract_strided_slice %6 {offsets = [0, 0], sizes = [1, 128], strides = [1, 1]} : vector<8x128xf32> to vector<1x128xf32>
    %8 = vector.extract_strided_slice %6 {offsets = [1, 0], sizes = [1, 128], strides = [1, 1]} : vector<8x128xf32> to vector<1x128xf32>
    %9 = vector.extract_strided_slice %6 {offsets = [2, 0], sizes = [1, 128], strides = [1, 1]} : vector<8x128xf32> to vector<1x128xf32>
    %10 = vector.extract_strided_slice %6 {offsets = [3, 0], sizes = [1, 128], strides = [1, 1]} : vector<8x128xf32> to vector<1x128xf32>
    %11 = vector.extract_strided_slice %6 {offsets = [4, 0], sizes = [1, 128], strides = [1, 1]} : vector<8x128xf32> to vector<1x128xf32>
    %12 = vector.extract_strided_slice %6 {offsets = [5, 0], sizes = [1, 128], strides = [1, 1]} : vector<8x128xf32> to vector<1x128xf32>
    %13 = vector.extract_strided_slice %6 {offsets = [6, 0], sizes = [1, 128], strides = [1, 1]} : vector<8x128xf32> to vector<1x128xf32>
    %14 = vector.extract_strided_slice %6 {offsets = [7, 0], sizes = [1, 128], strides = [1, 1]} : vector<8x128xf32> to vector<1x128xf32>
    %15 = tpu.iota {dimensions = array<i32: 1>} : vector<1x128xi32>
    %c64_i32 = arith.constant 64 : i32
    %16 = vector.broadcast %c64_i32 : i32 to vector<1x128xi32>
    %17 = arith.cmpi sge, %15, %16 : vector<1x128xi32>
    %c96_i32 = arith.constant 96 : i32
    %18 = vector.broadcast %c96_i32 : i32 to vector<1x128xi32>
    %19 = arith.cmpi slt, %15, %18 : vector<1x128xi32>
    %20 = arith.andi %17, %19 : vector<1x128xi1>
    %cst_5 = arith.constant 1.000000e+00 : f32
    %cst_6 = arith.constant 5.000000e-01 : f32
    %21 = vector.broadcast %cst_5 : f32 to vector<1x128xf32>
    %22 = vector.broadcast %cst_6 : f32 to vector<1x128xf32>
    %23 = arith.select %20, %21, %22 : vector<1x128xi1>, vector<1x128xf32>
    %cst_7 = arith.constant 0.000000e+00 : f32
    %24 = vector.broadcast %cst_7 : f32 to vector<1x32xf32>
    %cst_8 = arith.constant 0.000000e+00 : f32
    %25 = vector.broadcast %cst_8 : f32 to vector<1x32xf32>
    %cst_9 = arith.constant dense<0.000000e+00> : vector<1x128xf32>
    %26 = tpu.matmul %24, %1, %cst_9 {dimension_numbers = #tpu.dot_dimension_numbers<[1], [0], [0], [1], [0, 0, 1, 1], [], []>} : vector<1x32xf32>, vector<32x128xf32>, vector<1x128xf32> -> vector<1x128xf32>
    %27 = arith.addf %7, %26 : vector<1x128xf32>
    %28 = arith.mulf %27, %23 : vector<1x128xf32>
    %29 = math.tanh %28 : vector<1x128xf32>
    %cst_10 = arith.constant 5.000000e-01 : f32
    %30 = vector.broadcast %cst_10 : f32 to vector<1x128xf32>
    %31 = arith.mulf %30, %29 : vector<1x128xf32>
    %cst_11 = arith.constant 5.000000e-01 : f32
    %32 = vector.broadcast %cst_11 : f32 to vector<1x128xf32>
    %33 = arith.addf %31, %32 : vector<1x128xf32>
    %34 = arith.select %20, %29, %33 : vector<1x128xi1>, vector<1x128xf32>
    %35 = vector.extract_strided_slice %34 {offsets = [0, 0], sizes = [1, 32], strides = [1, 1]} : vector<1x128xf32> to vector<1x32xf32>
    %36 = vector.extract_strided_slice %34 {offsets = [0, 32], sizes = [1, 32], strides = [1, 1]} : vector<1x128xf32> to vector<1x32xf32>
    %37 = vector.extract_strided_slice %34 {offsets = [0, 64], sizes = [1, 32], strides = [1, 1]} : vector<1x128xf32> to vector<1x32xf32>
    %38 = vector.extract_strided_slice %34 {offsets = [0, 96], sizes = [1, 32], strides = [1, 1]} : vector<1x128xf32> to vector<1x32xf32>
    %39 = arith.mulf %36, %25 : vector<1x32xf32>
    %40 = arith.mulf %35, %37 : vector<1x32xf32>
    %41 = arith.addf %39, %40 : vector<1x32xf32>
    %42 = math.tanh %41 : vector<1x32xf32>
    %43 = arith.mulf %38, %42 : vector<1x32xf32>
    %cst_12 = arith.constant dense<0.000000e+00> : vector<1x128xf32>
    %44 = tpu.matmul %43, %1, %cst_12 {dimension_numbers = #tpu.dot_dimension_numbers<[1], [0], [0], [1], [0, 0, 1, 1], [], []>} : vector<1x32xf32>, vector<32x128xf32>, vector<1x128xf32> -> vector<1x128xf32>
    %45 = arith.addf %8, %44 : vector<1x128xf32>
    %46 = arith.mulf %45, %23 : vector<1x128xf32>
    %47 = math.tanh %46 : vector<1x128xf32>
    %cst_13 = arith.constant 5.000000e-01 : f32
    %48 = vector.broadcast %cst_13 : f32 to vector<1x128xf32>
    %49 = arith.mulf %48, %47 : vector<1x128xf32>
    %cst_14 = arith.constant 5.000000e-01 : f32
    %50 = vector.broadcast %cst_14 : f32 to vector<1x128xf32>
    %51 = arith.addf %49, %50 : vector<1x128xf32>
    %52 = arith.select %20, %47, %51 : vector<1x128xi1>, vector<1x128xf32>
    %53 = vector.extract_strided_slice %52 {offsets = [0, 0], sizes = [1, 32], strides = [1, 1]} : vector<1x128xf32> to vector<1x32xf32>
    %54 = vector.extract_strided_slice %52 {offsets = [0, 32], sizes = [1, 32], strides = [1, 1]} : vector<1x128xf32> to vector<1x32xf32>
    %55 = vector.extract_strided_slice %52 {offsets = [0, 64], sizes = [1, 32], strides = [1, 1]} : vector<1x128xf32> to vector<1x32xf32>
    %56 = vector.extract_strided_slice %52 {offsets = [0, 96], sizes = [1, 32], strides = [1, 1]} : vector<1x128xf32> to vector<1x32xf32>
    %57 = arith.mulf %54, %41 : vector<1x32xf32>
    %58 = arith.mulf %53, %55 : vector<1x32xf32>
    %59 = arith.addf %57, %58 : vector<1x32xf32>
    %60 = math.tanh %59 : vector<1x32xf32>
    %61 = arith.mulf %56, %60 : vector<1x32xf32>
    %cst_15 = arith.constant dense<0.000000e+00> : vector<1x128xf32>
    %62 = tpu.matmul %61, %1, %cst_15 {dimension_numbers = #tpu.dot_dimension_numbers<[1], [0], [0], [1], [0, 0, 1, 1], [], []>} : vector<1x32xf32>, vector<32x128xf32>, vector<1x128xf32> -> vector<1x128xf32>
    %63 = arith.addf %9, %62 : vector<1x128xf32>
    %64 = arith.mulf %63, %23 : vector<1x128xf32>
    %65 = math.tanh %64 : vector<1x128xf32>
    %cst_16 = arith.constant 5.000000e-01 : f32
    %66 = vector.broadcast %cst_16 : f32 to vector<1x128xf32>
    %67 = arith.mulf %66, %65 : vector<1x128xf32>
    %cst_17 = arith.constant 5.000000e-01 : f32
    %68 = vector.broadcast %cst_17 : f32 to vector<1x128xf32>
    %69 = arith.addf %67, %68 : vector<1x128xf32>
    %70 = arith.select %20, %65, %69 : vector<1x128xi1>, vector<1x128xf32>
    %71 = vector.extract_strided_slice %70 {offsets = [0, 0], sizes = [1, 32], strides = [1, 1]} : vector<1x128xf32> to vector<1x32xf32>
    %72 = vector.extract_strided_slice %70 {offsets = [0, 32], sizes = [1, 32], strides = [1, 1]} : vector<1x128xf32> to vector<1x32xf32>
    %73 = vector.extract_strided_slice %70 {offsets = [0, 64], sizes = [1, 32], strides = [1, 1]} : vector<1x128xf32> to vector<1x32xf32>
    %74 = vector.extract_strided_slice %70 {offsets = [0, 96], sizes = [1, 32], strides = [1, 1]} : vector<1x128xf32> to vector<1x32xf32>
    %75 = arith.mulf %72, %59 : vector<1x32xf32>
    %76 = arith.mulf %71, %73 : vector<1x32xf32>
    %77 = arith.addf %75, %76 : vector<1x32xf32>
    %78 = math.tanh %77 : vector<1x32xf32>
    %79 = arith.mulf %74, %78 : vector<1x32xf32>
    %cst_18 = arith.constant dense<0.000000e+00> : vector<1x128xf32>
    %80 = tpu.matmul %79, %1, %cst_18 {dimension_numbers = #tpu.dot_dimension_numbers<[1], [0], [0], [1], [0, 0, 1, 1], [], []>} : vector<1x32xf32>, vector<32x128xf32>, vector<1x128xf32> -> vector<1x128xf32>
    %81 = arith.addf %10, %80 : vector<1x128xf32>
    %82 = arith.mulf %81, %23 : vector<1x128xf32>
    %83 = math.tanh %82 : vector<1x128xf32>
    %cst_19 = arith.constant 5.000000e-01 : f32
    %84 = vector.broadcast %cst_19 : f32 to vector<1x128xf32>
    %85 = arith.mulf %84, %83 : vector<1x128xf32>
    %cst_20 = arith.constant 5.000000e-01 : f32
    %86 = vector.broadcast %cst_20 : f32 to vector<1x128xf32>
    %87 = arith.addf %85, %86 : vector<1x128xf32>
    %88 = arith.select %20, %83, %87 : vector<1x128xi1>, vector<1x128xf32>
    %89 = vector.extract_strided_slice %88 {offsets = [0, 0], sizes = [1, 32], strides = [1, 1]} : vector<1x128xf32> to vector<1x32xf32>
    %90 = vector.extract_strided_slice %88 {offsets = [0, 32], sizes = [1, 32], strides = [1, 1]} : vector<1x128xf32> to vector<1x32xf32>
    %91 = vector.extract_strided_slice %88 {offsets = [0, 64], sizes = [1, 32], strides = [1, 1]} : vector<1x128xf32> to vector<1x32xf32>
    %92 = vector.extract_strided_slice %88 {offsets = [0, 96], sizes = [1, 32], strides = [1, 1]} : vector<1x128xf32> to vector<1x32xf32>
    %93 = arith.mulf %90, %77 : vector<1x32xf32>
    %94 = arith.mulf %89, %91 : vector<1x32xf32>
    %95 = arith.addf %93, %94 : vector<1x32xf32>
    %96 = math.tanh %95 : vector<1x32xf32>
    %97 = arith.mulf %92, %96 : vector<1x32xf32>
    %cst_21 = arith.constant dense<0.000000e+00> : vector<1x128xf32>
    %98 = tpu.matmul %97, %1, %cst_21 {dimension_numbers = #tpu.dot_dimension_numbers<[1], [0], [0], [1], [0, 0, 1, 1], [], []>} : vector<1x32xf32>, vector<32x128xf32>, vector<1x128xf32> -> vector<1x128xf32>
    %99 = arith.addf %11, %98 : vector<1x128xf32>
    %100 = arith.mulf %99, %23 : vector<1x128xf32>
    %101 = math.tanh %100 : vector<1x128xf32>
    %cst_22 = arith.constant 5.000000e-01 : f32
    %102 = vector.broadcast %cst_22 : f32 to vector<1x128xf32>
    %103 = arith.mulf %102, %101 : vector<1x128xf32>
    %cst_23 = arith.constant 5.000000e-01 : f32
    %104 = vector.broadcast %cst_23 : f32 to vector<1x128xf32>
    %105 = arith.addf %103, %104 : vector<1x128xf32>
    %106 = arith.select %20, %101, %105 : vector<1x128xi1>, vector<1x128xf32>
    %107 = vector.extract_strided_slice %106 {offsets = [0, 0], sizes = [1, 32], strides = [1, 1]} : vector<1x128xf32> to vector<1x32xf32>
    %108 = vector.extract_strided_slice %106 {offsets = [0, 32], sizes = [1, 32], strides = [1, 1]} : vector<1x128xf32> to vector<1x32xf32>
    %109 = vector.extract_strided_slice %106 {offsets = [0, 64], sizes = [1, 32], strides = [1, 1]} : vector<1x128xf32> to vector<1x32xf32>
    %110 = vector.extract_strided_slice %106 {offsets = [0, 96], sizes = [1, 32], strides = [1, 1]} : vector<1x128xf32> to vector<1x32xf32>
    %111 = arith.mulf %108, %95 : vector<1x32xf32>
    %112 = arith.mulf %107, %109 : vector<1x32xf32>
    %113 = arith.addf %111, %112 : vector<1x32xf32>
    %114 = math.tanh %113 : vector<1x32xf32>
    %115 = arith.mulf %110, %114 : vector<1x32xf32>
    %cst_24 = arith.constant dense<0.000000e+00> : vector<1x128xf32>
    %116 = tpu.matmul %115, %1, %cst_24 {dimension_numbers = #tpu.dot_dimension_numbers<[1], [0], [0], [1], [0, 0, 1, 1], [], []>} : vector<1x32xf32>, vector<32x128xf32>, vector<1x128xf32> -> vector<1x128xf32>
    %117 = arith.addf %12, %116 : vector<1x128xf32>
    %118 = arith.mulf %117, %23 : vector<1x128xf32>
    %119 = math.tanh %118 : vector<1x128xf32>
    %cst_25 = arith.constant 5.000000e-01 : f32
    %120 = vector.broadcast %cst_25 : f32 to vector<1x128xf32>
    %121 = arith.mulf %120, %119 : vector<1x128xf32>
    %cst_26 = arith.constant 5.000000e-01 : f32
    %122 = vector.broadcast %cst_26 : f32 to vector<1x128xf32>
    %123 = arith.addf %121, %122 : vector<1x128xf32>
    %124 = arith.select %20, %119, %123 : vector<1x128xi1>, vector<1x128xf32>
    %125 = vector.extract_strided_slice %124 {offsets = [0, 0], sizes = [1, 32], strides = [1, 1]} : vector<1x128xf32> to vector<1x32xf32>
    %126 = vector.extract_strided_slice %124 {offsets = [0, 32], sizes = [1, 32], strides = [1, 1]} : vector<1x128xf32> to vector<1x32xf32>
    %127 = vector.extract_strided_slice %124 {offsets = [0, 64], sizes = [1, 32], strides = [1, 1]} : vector<1x128xf32> to vector<1x32xf32>
    %128 = vector.extract_strided_slice %124 {offsets = [0, 96], sizes = [1, 32], strides = [1, 1]} : vector<1x128xf32> to vector<1x32xf32>
    %129 = arith.mulf %126, %113 : vector<1x32xf32>
    %130 = arith.mulf %125, %127 : vector<1x32xf32>
    %131 = arith.addf %129, %130 : vector<1x32xf32>
    %132 = math.tanh %131 : vector<1x32xf32>
    %133 = arith.mulf %128, %132 : vector<1x32xf32>
    %cst_27 = arith.constant dense<0.000000e+00> : vector<1x128xf32>
    %134 = tpu.matmul %133, %1, %cst_27 {dimension_numbers = #tpu.dot_dimension_numbers<[1], [0], [0], [1], [0, 0, 1, 1], [], []>} : vector<1x32xf32>, vector<32x128xf32>, vector<1x128xf32> -> vector<1x128xf32>
    %135 = arith.addf %13, %134 : vector<1x128xf32>
    %136 = arith.mulf %135, %23 : vector<1x128xf32>
    %137 = math.tanh %136 : vector<1x128xf32>
    %cst_28 = arith.constant 5.000000e-01 : f32
    %138 = vector.broadcast %cst_28 : f32 to vector<1x128xf32>
    %139 = arith.mulf %138, %137 : vector<1x128xf32>
    %cst_29 = arith.constant 5.000000e-01 : f32
    %140 = vector.broadcast %cst_29 : f32 to vector<1x128xf32>
    %141 = arith.addf %139, %140 : vector<1x128xf32>
    %142 = arith.select %20, %137, %141 : vector<1x128xi1>, vector<1x128xf32>
    %143 = vector.extract_strided_slice %142 {offsets = [0, 0], sizes = [1, 32], strides = [1, 1]} : vector<1x128xf32> to vector<1x32xf32>
    %144 = vector.extract_strided_slice %142 {offsets = [0, 32], sizes = [1, 32], strides = [1, 1]} : vector<1x128xf32> to vector<1x32xf32>
    %145 = vector.extract_strided_slice %142 {offsets = [0, 64], sizes = [1, 32], strides = [1, 1]} : vector<1x128xf32> to vector<1x32xf32>
    %146 = vector.extract_strided_slice %142 {offsets = [0, 96], sizes = [1, 32], strides = [1, 1]} : vector<1x128xf32> to vector<1x32xf32>
    %147 = arith.mulf %144, %131 : vector<1x32xf32>
    %148 = arith.mulf %143, %145 : vector<1x32xf32>
    %149 = arith.addf %147, %148 : vector<1x32xf32>
    %150 = math.tanh %149 : vector<1x32xf32>
    %151 = arith.mulf %146, %150 : vector<1x32xf32>
    %cst_30 = arith.constant dense<0.000000e+00> : vector<1x128xf32>
    %152 = tpu.matmul %151, %1, %cst_30 {dimension_numbers = #tpu.dot_dimension_numbers<[1], [0], [0], [1], [0, 0, 1, 1], [], []>} : vector<1x32xf32>, vector<32x128xf32>, vector<1x128xf32> -> vector<1x128xf32>
    %153 = arith.addf %14, %152 : vector<1x128xf32>
    %154 = arith.mulf %153, %23 : vector<1x128xf32>
    %155 = math.tanh %154 : vector<1x128xf32>
    %cst_31 = arith.constant 5.000000e-01 : f32
    %156 = vector.broadcast %cst_31 : f32 to vector<1x128xf32>
    %157 = arith.mulf %156, %155 : vector<1x128xf32>
    %cst_32 = arith.constant 5.000000e-01 : f32
    %158 = vector.broadcast %cst_32 : f32 to vector<1x128xf32>
    %159 = arith.addf %157, %158 : vector<1x128xf32>
    %160 = arith.select %20, %155, %159 : vector<1x128xi1>, vector<1x128xf32>
    %161 = vector.extract_strided_slice %160 {offsets = [0, 0], sizes = [1, 32], strides = [1, 1]} : vector<1x128xf32> to vector<1x32xf32>
    %162 = vector.extract_strided_slice %160 {offsets = [0, 32], sizes = [1, 32], strides = [1, 1]} : vector<1x128xf32> to vector<1x32xf32>
    %163 = vector.extract_strided_slice %160 {offsets = [0, 64], sizes = [1, 32], strides = [1, 1]} : vector<1x128xf32> to vector<1x32xf32>
    %164 = vector.extract_strided_slice %160 {offsets = [0, 96], sizes = [1, 32], strides = [1, 1]} : vector<1x128xf32> to vector<1x32xf32>
    %165 = arith.mulf %162, %149 : vector<1x32xf32>
    %166 = arith.mulf %161, %163 : vector<1x32xf32>
    %167 = arith.addf %165, %166 : vector<1x32xf32>
    %168 = math.tanh %167 : vector<1x32xf32>
    %169 = arith.mulf %164, %168 : vector<1x32xf32>
    %170 = tpu.concatenate %43, %61, %79, %97, %115, %133, %151, %169 in 0 : vector<1x32xf32>, vector<1x32xf32>, vector<1x32xf32>, vector<1x32xf32>, vector<1x32xf32>, vector<1x32xf32>, vector<1x32xf32>, vector<1x32xf32> -> vector<8x32xf32>
    %c0_33 = arith.constant 0 : index
    %c0_34 = arith.constant 0 : index
    %171 = vector.load %arg2[%c0_33, %c0_34] : memref<2x32xf32, #tpu.memory_space<vmem>>, vector<1x32xf32>
    %c1 = arith.constant 1 : index
    %c0_35 = arith.constant 0 : index
    %172 = vector.load %arg2[%c1, %c0_35] : memref<2x32xf32, #tpu.memory_space<vmem>>, vector<1x1xf32>
    %173 = vector.broadcast %171 : vector<1x32xf32> to vector<8x32xf32>
    %174 = arith.mulf %170, %173 : vector<8x32xf32>
    %cst_36 = arith.constant dense<0.000000e+00> : vector<8xf32>
    %175 = vector.multi_reduction <add>, %174, %cst_36 [1] : vector<8x32xf32> to vector<8xf32>
    %176 = vector.shape_cast %175 : vector<8xf32> to vector<8x1xf32>
    %177 = vector.broadcast %172 : vector<1x1xf32> to vector<8x1xf32>
    %178 = arith.addf %176, %177 : vector<8x1xf32>
    %c0_37 = arith.constant 0 : index
    %c0_38 = arith.constant 0 : index
    %179 = vector.load %arg3[%c0_37, %c0_38] : memref<8x1xf32, #tpu.memory_space<vmem>>, vector<8x1xf32>
    tpu.vector_store %arg3[%c0_37, %c0_38], %178 {strides = array<i32>} : memref<8x1xf32, #tpu.memory_space<vmem>>, vector<8x1xf32>,
    return
  }
}

</mosaic_0001>

<llo_original>
// kernel: tpu_custom_call.1
$region0: #{tpu_custom_call.1}
  #allocation0 [shape = 'u32[]', space=smem, size = 0x4, offset = 0x4, fixed_abs, tag = 'smem constant byte address 0x4 - core index']
  #allocation1 [shape = 'u32[144,128]{1,0:T(1,128)}', space=vmem, size = 0x12000, scoped, tag = 'internal scratch']
  %s0 = inlined_call_operand.hbm [shape: f32[8,8], index: 0, kind: input, shape index: {}]
  %s1 = inlined_call_operand.hbm [shape: f32[41,128], index: 1, kind: input, shape index: {}]
  %s2 = inlined_call_operand.vmem [shape: f32[2,32], index: 2, kind: input, shape index: {}]
  %s3 = inlined_call_operand.vmem [shape: f32[8,1], index: 3, kind: output, shape index: {}]
  %s4 = sld [smem:[#allocation0]]
  $region30: #{tpu_custom_call.1} parent=0
    _
  %s6 = ssub.s32 1, %s4
  %s7 = scalar_select 0, %s6, %s4
  $region1: #{tpu_custom_call.1} parent=0
    #allocation2 [shape = 'u8[4096]{0}', space=vmem, size = 0x1000, scoped, tag = 'input window, operand 0, single buffered']
    #allocation3 [shape = 's32[1]{0}', space=sflag, size = 0x4, scoped, tag = 'scoped memory for tpu_custom_call.1']
    #allocation4 [shape = 'u8[24576]{0}', space=vmem, size = 0x6000, scoped, tag = 'input window, operand 1, single buffered']
    #allocation5 [shape = 's32[1]{0}', space=sflag, size = 0x4, scoped, tag = 'scoped memory for tpu_custom_call.1']
    %8 = vsyncpa [#allocation3], 0
    %9 = vsyncpa [#allocation5], 0
    // Predicated region
    $region2: #{tpu_custom_call.1} parent=1 // pred_check
      _
    $region3: #{tpu_custom_call.1} parent=1 // pred_check_branch
      %11 = sbr.rel (0) target = $region5
    $region4: #{tpu_custom_call.1} parent=1 // pred_region
      %s13 = ssub.s32 128, 128
      %14 = vsyncadd [#allocation3], %s13
      %s16 = sshll.u32 [#allocation2], 4
      %s17 = int_to_ptr.vmem [resolvable:$true] %s16
      %19 = dma.hbm_to_vmem [thread:$0]  %s0, 128, %s17, [#allocation3]
    $region5: #{tpu_custom_call.1} parent=1 // pred_fallthru
      _
    // Predicated region
    $region6: #{tpu_custom_call.1} parent=1 // pred_check
      _
    $region7: #{tpu_custom_call.1} parent=1 // pred_check_branch
      %21 = sbr.rel (0) target = $region9
    $region8: #{tpu_custom_call.1} parent=1 // pred_region
      %s23 = ssub.s32 768, 768
      %24 = vsyncadd [#allocation5], %s23
      %s25 = sshll.u32 [#allocation4], 4
      %s26 = int_to_ptr.vmem [resolvable:$true] %s25
      %31 = dma.hbm_to_vmem [thread:$0]  %s1, 768, %s26, [#allocation5], 128, 128, 8
    $region9: #{tpu_custom_call.1} parent=1 // pred_fallthru
      _
    // Predicated region
    $region10: #{tpu_custom_call.1} parent=1 // pred_check
      _
    $region11: #{tpu_custom_call.1} parent=1 // pred_check_branch
      %33 = sbr.rel (0) target = $region13
    $region12: #{tpu_custom_call.1} parent=1 // pred_region
      _
    $region13: #{tpu_custom_call.1} parent=1 // pred_fallthru
      _
    // Predicated region
    $region14: #{tpu_custom_call.1} parent=1 // pred_check
      _
    $region15: #{tpu_custom_call.1} parent=1 // pred_check_branch
      %35 = sbr.rel (0) target = $region17
    $region16: #{tpu_custom_call.1} parent=1 // pred_region
      %36 = dma.done [#allocation3], 128
    $region17: #{tpu_custom_call.1} parent=1 // pred_fallthru
      _
    // Predicated region
    $region18: #{tpu_custom_call.1} parent=1 // pred_check
      _
    $region19: #{tpu_custom_call.1} parent=1 // pred_check_branch
      %38 = sbr.rel (0) target = $region21
    $region20: #{tpu_custom_call.1} parent=1 // pred_region
      %39 = dma.done [#allocation5], 768
    $region21: #{tpu_custom_call.1} parent=1 // pred_fallthru
      _
    %v40 = vld [vmem:[#allocation4] sm:$0xff]
    %v41 = vld [vmem:[#allocation4 + $0x8] sm:$0xff]
    %v42 = vld [vmem:[#allocation4 + $0x10] sm:$0xff]
    %v43 = vld [vmem:[#allocation4 + $0x18] sm:$0xff]
    %v44 = vld [vmem:[#allocation4 + $0x20] sm:$0xff]
    %v45 = vld [vmem:[#allocation4 + $0x28] sm:$0x1]
    %v46 = vld [vmem:[#allocation2] sm:$0xff]
    %v47 = vlaneseq
    %v48 = vshrl.u32 %v47, 7
    %v49 = vsub.s32 0, %v48
    %v50 = vrot.slane %v45, %v49
    %vm51 = vcmask 64512
    %v53 = vsel %vm51, %v46, 0
    %55 = vmatprep.subr.mxu0 0.0
    %56 = vmatpush1.msra.mxu0 %v40
    %57 = vmatprep.subr.mxu0 0.0
    %58 = vmatpush1.msra.mxu0 0.0
    %59 = vmatprep.subr.mxu0 0.0
    %60 = vmatpush1.msra.mxu0 0.0
    %61 = vmatprep.subr.mxu0 0.0
    %62 = vmatpush1.msra.mxu0 0.0
    %63 = vmatprep.subr.mxu0 0.0
    %64 = vmatpush1.msra.mxu0 0.0
    %65 = vmatprep.subr.mxu0 0.0
    %66 = vmatpush1.msra.mxu0 0.0
    %67 = vmatprep.subr.mxu0 0.0
    %68 = vmatpush1.msra.mxu0 0.0
    %69 = vmatprep.subr.mxu0 0.0
    %70 = vmatpush1.msra.mxu0 0.0
    %71 = vmatprep.subr.mxu0 0.0
    %72 = vmatpush1.msra.mxu0 0.0
    %73 = vmatprep.subr.mxu0 0.0
    %74 = vmatpush1.msra.mxu0 0.0
    %75 = vmatprep.subr.mxu0 0.0
    %76 = vmatpush1.msra.mxu0 0.0
    %77 = vmatprep.subr.mxu0 0.0
    %78 = vmatpush1.msra.mxu0 0.0
    %79 = vmatprep.subr.mxu0 0.0
    %80 = vmatpush1.msra.mxu0 0.0
    %81 = vmatprep.subr.mxu0 0.0
    %82 = vmatpush1.msra.mxu0 0.0
    %83 = vmatprep.subr.mxu0 0.0
    %84 = vmatpush1.msra.mxu0 0.0
    %85 = vmatprep.subr.mxu0 0.0
    %86 = vmatpush1.msra.mxu0 0.0
    %87 = vmatprep.subr.mxu0 0.0
    %88 = vmatpush1.msra.mxu0 0.0
    %89 = vmatprep.subr.mxu0 0.0
    %90 = vmatpush1.msra.mxu0 0.0
    %91 = vmatprep.subr.mxu0 0.0
    %92 = vmatpush1.msra.mxu0 0.0
    %93 = vmatprep.subr.mxu0 0.0
    %94 = vmatpush1.msra.mxu0 0.0
    %95 = vmatprep.subr.mxu0 0.0
    %96 = vmatpush1.msra.mxu0 0.0
    %97 = vmatprep.subr.mxu0 0.0
    %98 = vmatpush1.msra.mxu0 0.0
    %99 = vmatprep.subr.mxu0 0.0
    %100 = vmatpush1.msra.mxu0 0.0
    %101 = vmatprep.subr.mxu0 0.0
    %102 = vmatpush1.msra.mxu0 0.0
    %103 = vmatprep.subr.mxu0 0.0
    %104 = vmatpush1.msra.mxu0 0.0
    %105 = vmatprep.subr.mxu0 0.0
    %106 = vmatpush1.msra.mxu0 0.0
    %107 = vmatprep.subr.mxu0 0.0
    %108 = vmatpush1.msra.mxu0 0.0
    %109 = vmatprep.subr.mxu0 0.0
    %110 = vmatpush1.msra.mxu0 0.0
    %111 = vmatprep.subr.mxu0 0.0
    %112 = vmatpush1.msra.mxu0 0.0
    %113 = vmatprep.subr.mxu0 0.0
    %114 = vmatpush1.msra.mxu0 0.0
    %115 = vmatprep.subr.mxu0 0.0
    %116 = vmatpush1.msra.mxu0 0.0
    %117 = vmatprep.subr.mxu0 0.0
    %118 = vmatpush1.msra.mxu0 0.0
    %119 = vmatprep.mubr.f32.mxu0 0.0
    %120 = vmatmul.mubr.f32.gmra.mrb[0].mxu0 %v53
    %v121 = vpop.f32.mrb[0].mxu0
    %v122 = vadd.f32 %v50, %v121
    %v123 = vpop.f32.mrb[0].mxu0
    %124 = vdwg.mxu0
    %v125 = vlaneseq
    %v126 = vand.u32 %v125, 127
    %vm127 = vcmp.ge.s32.totalorder %v126, 64
    %vm128 = vcmp.lt.s32.totalorder %v126, 96
    %vm129 = vmand %vm127, %vm128
    %v130 = vsel %vm129, 1.0, 0.5
    %vm131 = vcmask 261120
    %v133 = vsel %vm131, 0.0, 0
    %135 = vmatprep.subr.mxu0 0.0
    %136 = vmatpush1.msra.mxu0 %v41
    %137 = vmatprep.subr.mxu0 0.0
    %138 = vmatpush1.msra.mxu0 %v42
    %139 = vmatprep.subr.mxu0 0.0
    %140 = vmatpush1.msra.mxu0 %v43
    %141 = vmatprep.subr.mxu0 0.0
    %142 = vmatpush1.msra.mxu0 %v44
    %143 = vmatprep.subr.mxu0 0.0
    %144 = vmatpush1.msra.mxu0 0.0
    %145 = vmatprep.subr.mxu0 0.0
    %146 = vmatpush1.msra.mxu0 0.0
    %147 = vmatprep.subr.mxu0 0.0
    %148 = vmatpush1.msra.mxu0 0.0
    %149 = vmatprep.subr.mxu0 0.0
    %150 = vmatpush1.msra.mxu0 0.0
    %151 = vmatprep.subr.mxu0 0.0
    %152 = vmatpush1.msra.mxu0 0.0
    %153 = vmatprep.subr.mxu0 0.0
    %154 = vmatpush1.msra.mxu0 0.0
    %155 = vmatprep.subr.mxu0 0.0
    %156 = vmatpush1.msra.mxu0 0.0
    %157 = vmatprep.subr.mxu0 0.0
    %158 = vmatpush1.msra.mxu0 0.0
    %159 = vmatprep.subr.mxu0 0.0
    %160 = vmatpush1.msra.mxu0 0.0
    %161 = vmatprep.subr.mxu0 0.0
    %162 = vmatpush1.msra.mxu0 0.0
    %163 = vmatprep.subr.mxu0 0.0
    %164 = vmatpush1.msra.mxu0 0.0
    %165 = vmatprep.subr.mxu0 0.0
    %166 = vmatpush1.msra.mxu0 0.0
    %167 = vmatprep.subr.mxu0 0.0
    %168 = vmatpush1.msra.mxu0 0.0
    %169 = vmatprep.subr.mxu0 0.0
    %170 = vmatpush1.msra.mxu0 0.0
    %171 = vmatprep.subr.mxu0 0.0
    %172 = vmatpush1.msra.mxu0 0.0
    %173 = vmatprep.subr.mxu0 0.0
    %174 = vmatpush1.msra.mxu0 0.0
    %175 = vmatprep.subr.mxu0 0.0
    %176 = vmatpush1.msra.mxu0 0.0
    %177 = vmatprep.subr.mxu0 0.0
    %178 = vmatpush1.msra.mxu0 0.0
    %179 = vmatprep.subr.mxu0 0.0
    %180 = vmatpush1.msra.mxu0 0.0
    %181 = vmatprep.subr.mxu0 0.0
    %182 = vmatpush1.msra.mxu0 0.0
    %183 = vmatprep.subr.mxu0 0.0
    %184 = vmatpush1.msra.mxu0 0.0
    %185 = vmatprep.subr.mxu0 0.0
    %186 = vmatpush1.msra.mxu0 0.0
    %187 = vmatprep.subr.mxu0 0.0
    %188 = vmatpush1.msra.mxu0 0.0
    %189 = vmatprep.subr.mxu0 0.0
    %190 = vmatpush1.msra.mxu0 0.0
    %191 = vmatprep.subr.mxu0 0.0
    %192 = vmatpush1.msra.mxu0 0.0
    %193 = vmatprep.subr.mxu0 0.0
    %194 = vmatpush1.msra.mxu0 0.0
    %195 = vmatprep.subr.mxu0 0.0
    %196 = vmatpush1.msra.mxu0 0.0
    %197 = vmatprep.subr.mxu0 0.0
    %198 = vmatpush1.msra.mxu0 0.0
    %199 = vmatprep.mubr.f32.mxu0 0.0
    %200 = vmatmul.mubr.f32.gmra.mrb[0].mxu0 %v133
    %v201 = vpop.f32.mrb[0].mxu0
    %v202 = vadd.f32 0.0, %v201
    %v203 = vpop.f32.mrb[0].mxu0
    %204 = vdwg.mxu0
    %v205 = vadd.f32 %v122, %v202
    %v206 = vmul.f32 %v205, %v130
    %v207 = vtanh.pop %v206
    %v208 = vmul.f32 %v207, 0.5
    %v209 = vadd.f32 %v208, 0.5
    %v210 = vsel %vm129, %v207, %v209
    %v211 = vmul.f32 %v210, 0.0
    %213 = vrot.lane.b32.xlu0 %v210, 64
    %v214 = vpop.permute.xlu0 %213
    %v216 = vmul.f32 %v210, %v214
    %218 = vrot.lane.b32.xlu0 %v216, 32
    %v219 = vpop.permute.xlu0 %218
    %v221 = vadd.f32 %v211, %v219
    %v222 = vtanh.pop %v221
    %224 = vrot.lane.b32.xlu0 %v222, 64
    %v225 = vpop.permute.xlu0 %224
    %v227 = vmul.f32 %v210, %v225
    %229 = vrot.lane.b32.xlu0 %v227, 32
    %v230 = vpop.permute.xlu0 %229
    %v231 = vsel %vm131, %v230, 0
    %233 = vmatprep.subr.mxu0 0.0
    %234 = vmatpush1.msra.mxu0 %v41
    %235 = vmatprep.subr.mxu0 0.0
    %236 = vmatpush1.msra.mxu0 %v42
    %237 = vmatprep.subr.mxu0 0.0
    %238 = vmatpush1.msra.mxu0 %v43
    %239 = vmatprep.subr.mxu0 0.0
    %240 = vmatpush1.msra.mxu0 %v44
    %241 = vmatprep.subr.mxu0 0.0
    %242 = vmatpush1.msra.mxu0 0.0
    %243 = vmatprep.subr.mxu0 0.0
    %244 = vmatpush1.msra.mxu0 0.0
    %245 = vmatprep.subr.mxu0 0.0
    %246 = vmatpush1.msra.mxu0 0.0
    %247 = vmatprep.subr.mxu0 0.0
    %248 = vmatpush1.msra.mxu0 0.0
    %249 = vmatprep.subr.mxu0 0.0
    %250 = vmatpush1.msra.mxu0 0.0
    %251 = vmatprep.subr.mxu0 0.0
    %252 = vmatpush1.msra.mxu0 0.0
    %253 = vmatprep.subr.mxu0 0.0
    %254 = vmatpush1.msra.mxu0 0.0
    %255 = vmatprep.subr.mxu0 0.0
    %256 = vmatpush1.msra.mxu0 0.0
    %257 = vmatprep.subr.mxu0 0.0
    %258 = vmatpush1.msra.mxu0 0.0
    %259 = vmatprep.subr.mxu0 0.0
    %260 = vmatpush1.msra.mxu0 0.0
    %261 = vmatprep.subr.mxu0 0.0
    %262 = vmatpush1.msra.mxu0 0.0
    %263 = vmatprep.subr.mxu0 0.0
    %264 = vmatpush1.msra.mxu0 0.0
    %265 = vmatprep.subr.mxu0 0.0
    %266 = vmatpush1.msra.mxu0 0.0
    %267 = vmatprep.subr.mxu0 0.0
    %268 = vmatpush1.msra.mxu0 0.0
    %269 = vmatprep.subr.mxu0 0.0
    %270 = vmatpush1.msra.mxu0 0.0
    %271 = vmatprep.subr.mxu0 0.0
    %272 = vmatpush1.msra.mxu0 0.0
    %273 = vmatprep.subr.mxu0 0.0
    %274 = vmatpush1.msra.mxu0 0.0
    %275 = vmatprep.subr.mxu0 0.0
    %276 = vmatpush1.msra.mxu0 0.0
    %277 = vmatprep.subr.mxu0 0.0
    %278 = vmatpush1.msra.mxu0 0.0
    %279 = vmatprep.subr.mxu0 0.0
    %280 = vmatpush1.msra.mxu0 0.0
    %281 = vmatprep.subr.mxu0 0.0
    %282 = vmatpush1.msra.mxu0 0.0
    %283 = vmatprep.subr.mxu0 0.0
    %284 = vmatpush1.msra.mxu0 0.0
    %285 = vmatprep.subr.mxu0 0.0
    %286 = vmatpush1.msra.mxu0 0.0
    %287 = vmatprep.subr.mxu0 0.0
    %288 = vmatpush1.msra.mxu0 0.0
    %289 = vmatprep.subr.mxu0 0.0
    %290 = vmatpush1.msra.mxu0 0.0
    %291 = vmatprep.subr.mxu0 0.0
    %292 = vmatpush1.msra.mxu0 0.0
    %293 = vmatprep.subr.mxu0 0.0
    %294 = vmatpush1.msra.mxu0 0.0
    %295 = vmatprep.subr.mxu0 0.0
    %296 = vmatpush1.msra.mxu0 0.0
    %297 = vmatprep.mubr.f32.mxu0 0.0
    %298 = vmatmul.mubr.f32.gmra.mrb[0].mxu0 %v231
    %v299 = vpop.f32.mrb[0].mxu0
    %v300 = vadd.f32 0.0, %v299
    %v301 = vpop.f32.mrb[0].mxu0
    %302 = vdwg.mxu0
    %v304 = vrot.slane %v300, 7
    %v306 = vadd.f32 %v122, %v304
    %v307 = vmul.f32 %v306, %v130
    %v308 = vtanh.pop %v307
    %v309 = vmul.f32 %v308, 0.5
    %v310 = vadd.f32 %v309, 0.5
    %v311 = vsel %vm129, %v308, %v310
    %v313 = vrot.slane %v221, 7
    %v315 = vmul.f32 %v311, %v313
    %317 = vrot.lane.b32.xlu0 %v311, 64
    %v318 = vpop.permute.xlu0 %317
    %v320 = vmul.f32 %v311, %v318
    %322 = vrot.lane.b32.xlu0 %v320, 32
    %v323 = vpop.permute.xlu0 %322
    %v325 = vadd.f32 %v315, %v323
    %v326 = vtanh.pop %v325
    %328 = vrot.lane.b32.xlu0 %v326, 64
    %v329 = vpop.permute.xlu0 %328
    %v331 = vmul.f32 %v311, %v329
    %v333 = vrot.slane %v331, 1
    %334 = vrot.lane.b32.xlu0 %v333, 32
    %v335 = vpop.permute.xlu0 %334
    %v336 = vsel %vm131, %v335, 0
    %338 = vmatprep.subr.mxu0 0.0
    %339 = vmatpush1.msra.mxu0 %v41
    %340 = vmatprep.subr.mxu0 0.0
    %341 = vmatpush1.msra.mxu0 %v42
    %342 = vmatprep.subr.mxu0 0.0
    %343 = vmatpush1.msra.mxu0 %v43
    %344 = vmatprep.subr.mxu0 0.0
    %345 = vmatpush1.msra.mxu0 %v44
    %346 = vmatprep.subr.mxu0 0.0
    %347 = vmatpush1.msra.mxu0 0.0
    %348 = vmatprep.subr.mxu0 0.0
    %349 = vmatpush1.msra.mxu0 0.0
    %350 = vmatprep.subr.mxu0 0.0
    %351 = vmatpush1.msra.mxu0 0.0
    %352 = vmatprep.subr.mxu0 0.0
    %353 = vmatpush1.msra.mxu0 0.0
    %354 = vmatprep.subr.mxu0 0.0
    %355 = vmatpush1.msra.mxu0 0.0
    %356 = vmatprep.subr.mxu0 0.0
    %357 = vmatpush1.msra.mxu0 0.0
    %358 = vmatprep.subr.mxu0 0.0
    %359 = vmatpush1.msra.mxu0 0.0
    %360 = vmatprep.subr.mxu0 0.0
    %361 = vmatpush1.msra.mxu0 0.0
    %362 = vmatprep.subr.mxu0 0.0
    %363 = vmatpush1.msra.mxu0 0.0
    %364 = vmatprep.subr.mxu0 0.0
    %365 = vmatpush1.msra.mxu0 0.0
    %366 = vmatprep.subr.mxu0 0.0
    %367 = vmatpush1.msra.mxu0 0.0
    %368 = vmatprep.subr.mxu0 0.0
    %369 = vmatpush1.msra.mxu0 0.0
    %370 = vmatprep.subr.mxu0 0.0
    %371 = vmatpush1.msra.mxu0 0.0
    %372 = vmatprep.subr.mxu0 0.0
    %373 = vmatpush1.msra.mxu0 0.0
    %374 = vmatprep.subr.mxu0 0.0
    %375 = vmatpush1.msra.mxu0 0.0
    %376 = vmatprep.subr.mxu0 0.0
    %377 = vmatpush1.msra.mxu0 0.0
    %378 = vmatprep.subr.mxu0 0.0
    %379 = vmatpush1.msra.mxu0 0.0
    %380 = vmatprep.subr.mxu0 0.0
    %381 = vmatpush1.msra.mxu0 0.0
    %382 = vmatprep.subr.mxu0 0.0
    %383 = vmatpush1.msra.mxu0 0.0
    %384 = vmatprep.subr.mxu0 0.0
    %385 = vmatpush1.msra.mxu0 0.0
    %386 = vmatprep.subr.mxu0 0.0
    %387 = vmatpush1.msra.mxu0 0.0
    %388 = vmatprep.subr.mxu0 0.0
    %389 = vmatpush1.msra.mxu0 0.0
    %390 = vmatprep.subr.mxu0 0.0
    %391 = vmatpush1.msra.mxu0 0.0
    %392 = vmatprep.subr.mxu0 0.0
    %393 = vmatpush1.msra.mxu0 0.0
    %394 = vmatprep.subr.mxu0 0.0
    %395 = vmatpush1.msra.mxu0 0.0
    %396 = vmatprep.subr.mxu0 0.0
    %397 = vmatpush1.msra.mxu0 0.0
    %398 = vmatprep.subr.mxu0 0.0
    %399 = vmatpush1.msra.mxu0 0.0
    %400 = vmatprep.subr.mxu0 0.0
    %401 = vmatpush1.msra.mxu0 0.0
    %402 = vmatprep.mubr.f32.mxu0 0.0
    %403 = vmatmul.mubr.f32.gmra.mrb[0].mxu0 %v336
    %v404 = vpop.f32.mrb[0].mxu0
    %v405 = vadd.f32 0.0, %v404
    %v406 = vpop.f32.mrb[0].mxu0
    %407 = vdwg.mxu0
    %v409 = vrot.slane %v405, 6
    %v411 = vadd.f32 %v122, %v409
    %v412 = vmul.f32 %v411, %v130
    %v413 = vtanh.pop %v412
    %v414 = vmul.f32 %v413, 0.5
    %v415 = vadd.f32 %v414, 0.5
    %v416 = vsel %vm129, %v413, %v415
    %v418 = vrot.slane %v325, 7
    %v420 = vmul.f32 %v416, %v418
    %422 = vrot.lane.b32.xlu0 %v416, 64
    %v423 = vpop.permute.xlu0 %422
    %v425 = vmul.f32 %v416, %v423
    %427 = vrot.lane.b32.xlu0 %v425, 32
    %v428 = vpop.permute.xlu0 %427
    %v430 = vadd.f32 %v420, %v428
    %v431 = vtanh.pop %v430
    %433 = vrot.lane.b32.xlu0 %v431, 64
    %v434 = vpop.permute.xlu0 %433
    %v436 = vmul.f32 %v416, %v434
    %v438 = vrot.slane %v436, 2
    %439 = vrot.lane.b32.xlu0 %v438, 32
    %v440 = vpop.permute.xlu0 %439
    %v441 = vsel %vm131, %v440, 0
    %443 = vmatprep.subr.mxu0 0.0
    %444 = vmatpush1.msra.mxu0 %v41
    %445 = vmatprep.subr.mxu0 0.0
    %446 = vmatpush1.msra.mxu0 %v42
    %447 = vmatprep.subr.mxu0 0.0
    %448 = vmatpush1.msra.mxu0 %v43
    %449 = vmatprep.subr.mxu0 0.0
    %450 = vmatpush1.msra.mxu0 %v44
    %451 = vmatprep.subr.mxu0 0.0
    %452 = vmatpush1.msra.mxu0 0.0
    %453 = vmatprep.subr.mxu0 0.0
    %454 = vmatpush1.msra.mxu0 0.0
    %455 = vmatprep.subr.mxu0 0.0
    %456 = vmatpush1.msra.mxu0 0.0
    %457 = vmatprep.subr.mxu0 0.0
    %458 = vmatpush1.msra.mxu0 0.0
    %459 = vmatprep.subr.mxu0 0.0
    %460 = vmatpush1.msra.mxu0 0.0
    %461 = vmatprep.subr.mxu0 0.0
    %462 = vmatpush1.msra.mxu0 0.0
    %463 = vmatprep.subr.mxu0 0.0
    %464 = vmatpush1.msra.mxu0 0.0
    %465 = vmatprep.subr.mxu0 0.0
    %466 = vmatpush1.msra.mxu0 0.0
    %467 = vmatprep.subr.mxu0 0.0
    %468 = vmatpush1.msra.mxu0 0.0
    %469 = vmatprep.subr.mxu0 0.0
    %470 = vmatpush1.msra.mxu0 0.0
    %471 = vmatprep.subr.mxu0 0.0
    %472 = vmatpush1.msra.mxu0 0.0
    %473 = vmatprep.subr.mxu0 0.0
    %474 = vmatpush1.msra.mxu0 0.0
    %475 = vmatprep.subr.mxu0 0.0
    %476 = vmatpush1.msra.mxu0 0.0
    %477 = vmatprep.subr.mxu0 0.0
    %478 = vmatpush1.msra.mxu0 0.0
    %479 = vmatprep.subr.mxu0 0.0
    %480 = vmatpush1.msra.mxu0 0.0
    %481 = vmatprep.subr.mxu0 0.0
    %482 = vmatpush1.msra.mxu0 0.0
    %483 = vmatprep.subr.mxu0 0.0
    %484 = vmatpush1.msra.mxu0 0.0
    %485 = vmatprep.subr.mxu0 0.0
    %486 = vmatpush1.msra.mxu0 0.0
    %487 = vmatprep.subr.mxu0 0.0
    %488 = vmatpush1.msra.mxu0 0.0
    %489 = vmatprep.subr.mxu0 0.0
    %490 = vmatpush1.msra.mxu0 0.0
    %491 = vmatprep.subr.mxu0 0.0
    %492 = vmatpush1.msra.mxu0 0.0
    %493 = vmatprep.subr.mxu0 0.0
    %494 = vmatpush1.msra.mxu0 0.0
    %495 = vmatprep.subr.mxu0 0.0
    %496 = vmatpush1.msra.mxu0 0.0
    %497 = vmatprep.subr.mxu0 0.0
    %498 = vmatpush1.msra.mxu0 0.0
    %499 = vmatprep.subr.mxu0 0.0
    %500 = vmatpush1.msra.mxu0 0.0
    %501 = vmatprep.subr.mxu0 0.0
    %502 = vmatpush1.msra.mxu0 0.0
    %503 = vmatprep.subr.mxu0 0.0
    %504 = vmatpush1.msra.mxu0 0.0
    %505 = vmatprep.subr.mxu0 0.0
    %506 = vmatpush1.msra.mxu0 0.0
    %507 = vmatprep.mubr.f32.mxu0 0.0
    %508 = vmatmul.mubr.f32.gmra.mrb[0].mxu0 %v441
    %v509 = vpop.f32.mrb[0].mxu0
    %v510 = vadd.f32 0.0, %v509
    %v511 = vpop.f32.mrb[0].mxu0
    %512 = vdwg.mxu0
    %v514 = vrot.slane %v510, 5
    %v516 = vadd.f32 %v122, %v514
    %v517 = vmul.f32 %v516, %v130
    %v518 = vtanh.pop %v517
    %v519 = vmul.f32 %v518, 0.5
    %v520 = vadd.f32 %v519, 0.5
    %v521 = vsel %vm129, %v518, %v520
    %v523 = vrot.slane %v430, 7
    %v525 = vmul.f32 %v521, %v523
    %527 = vrot.lane.b32.xlu0 %v521, 64
    %v528 = vpop.permute.xlu0 %527
    %v530 = vmul.f32 %v521, %v528
    %532 = vrot.lane.b32.xlu0 %v530, 32
    %v533 = vpop.permute.xlu0 %532
    %v535 = vadd.f32 %v525, %v533
    %v536 = vtanh.pop %v535
    %538 = vrot.lane.b32.xlu0 %v536, 64
    %v539 = vpop.permute.xlu0 %538
    %v541 = vmul.f32 %v521, %v539
    %v543 = vrot.slane %v541, 3
    %544 = vrot.lane.b32.xlu0 %v543, 32
    %v545 = vpop.permute.xlu0 %544
    %v546 = vsel %vm131, %v545, 0
    %548 = vmatprep.subr.mxu0 0.0
    %549 = vmatpush1.msra.mxu0 %v41
    %550 = vmatprep.subr.mxu0 0.0
    %551 = vmatpush1.msra.mxu0 %v42
    %552 = vmatprep.subr.mxu0 0.0
    %553 = vmatpush1.msra.mxu0 %v43
    %554 = vmatprep.subr.mxu0 0.0
    %555 = vmatpush1.msra.mxu0 %v44
    %556 = vmatprep.subr.mxu0 0.0
    %557 = vmatpush1.msra.mxu0 0.0
    %558 = vmatprep.subr.mxu0 0.0
    %559 = vmatpush1.msra.mxu0 0.0
    %560 = vmatprep.subr.mxu0 0.0
    %561 = vmatpush1.msra.mxu0 0.0
    %562 = vmatprep.subr.mxu0 0.0
    %563 = vmatpush1.msra.mxu0 0.0
    %564 = vmatprep.subr.mxu0 0.0
    %565 = vmatpush1.msra.mxu0 0.0
    %566 = vmatprep.subr.mxu0 0.0
    %567 = vmatpush1.msra.mxu0 0.0
    %568 = vmatprep.subr.mxu0 0.0
    %569 = vmatpush1.msra.mxu0 0.0
    %570 = vmatprep.subr.mxu0 0.0
    %571 = vmatpush1.msra.mxu0 0.0
    %572 = vmatprep.subr.mxu0 0.0
    %573 = vmatpush1.msra.mxu0 0.0
    %574 = vmatprep.subr.mxu0 0.0
    %575 = vmatpush1.msra.mxu0 0.0
    %576 = vmatprep.subr.mxu0 0.0
    %577 = vmatpush1.msra.mxu0 0.0
    %578 = vmatprep.subr.mxu0 0.0
    %579 = vmatpush1.msra.mxu0 0.0
    %580 = vmatprep.subr.mxu0 0.0
    %581 = vmatpush1.msra.mxu0 0.0
    %582 = vmatprep.subr.mxu0 0.0
    %583 = vmatpush1.msra.mxu0 0.0
    %584 = vmatprep.subr.mxu0 0.0
    %585 = vmatpush1.msra.mxu0 0.0
    %586 = vmatprep.subr.mxu0 0.0
    %587 = vmatpush1.msra.mxu0 0.0
    %588 = vmatprep.subr.mxu0 0.0
    %589 = vmatpush1.msra.mxu0 0.0
    %590 = vmatprep.subr.mxu0 0.0
    %591 = vmatpush1.msra.mxu0 0.0
    %592 = vmatprep.subr.mxu0 0.0
    %593 = vmatpush1.msra.mxu0 0.0
    %594 = vmatprep.subr.mxu0 0.0
    %595 = vmatpush1.msra.mxu0 0.0
    %596 = vmatprep.subr.mxu0 0.0
    %597 = vmatpush1.msra.mxu0 0.0
    %598 = vmatprep.subr.mxu0 0.0
    %599 = vmatpush1.msra.mxu0 0.0
    %600 = vmatprep.subr.mxu0 0.0
    %601 = vmatpush1.msra.mxu0 0.0
    %602 = vmatprep.subr.mxu0 0.0
    %603 = vmatpush1.msra.mxu0 0.0
    %604 = vmatprep.subr.mxu0 0.0
    %605 = vmatpush1.msra.mxu0 0.0
    %606 = vmatprep.subr.mxu0 0.0
    %607 = vmatpush1.msra.mxu0 0.0
    %608 = vmatprep.subr.mxu0 0.0
    %609 = vmatpush1.msra.mxu0 0.0
    %610 = vmatprep.subr.mxu0 0.0
    %611 = vmatpush1.msra.mxu0 0.0
    %612 = vmatprep.mubr.f32.mxu0 0.0
    %613 = vmatmul.mubr.f32.gmra.mrb[0].mxu0 %v546
    %v614 = vpop.f32.mrb[0].mxu0
    %v615 = vadd.f32 0.0, %v614
    %v616 = vpop.f32.mrb[0].mxu0
    %617 = vdwg.mxu0
    %v619 = vrot.slane %v615, 4
    %v621 = vadd.f32 %v122, %v619
    %v622 = vmul.f32 %v621, %v130
    %v623 = vtanh.pop %v622
    %v624 = vmul.f32 %v623, 0.5
    %v625 = vadd.f32 %v624, 0.5
    %v626 = vsel %vm129, %v623, %v625
    %v628 = vrot.slane %v535, 7
    %v630 = vmul.f32 %v626, %v628
    %632 = vrot.lane.b32.xlu0 %v626, 64
    %v633 = vpop.permute.xlu0 %632
    %v635 = vmul.f32 %v626, %v633
    %637 = vrot.lane.b32.xlu0 %v635, 32
    %v638 = vpop.permute.xlu0 %637
    %v640 = vadd.f32 %v630, %v638
    %v641 = vtanh.pop %v640
    %643 = vrot.lane.b32.xlu0 %v641, 64
    %v644 = vpop.permute.xlu0 %643
    %v646 = vmul.f32 %v626, %v644
    %v648 = vrot.slane %v646, 4
    %649 = vrot.lane.b32.xlu0 %v648, 32
    %v650 = vpop.permute.xlu0 %649
    %v651 = vsel %vm131, %v650, 0
    %653 = vmatprep.subr.mxu0 0.0
    %654 = vmatpush1.msra.mxu0 %v41
    %655 = vmatprep.subr.mxu0 0.0
    %656 = vmatpush1.msra.mxu0 %v42
    %657 = vmatprep.subr.mxu0 0.0
    %658 = vmatpush1.msra.mxu0 %v43
    %659 = vmatprep.subr.mxu0 0.0
    %660 = vmatpush1.msra.mxu0 %v44
    %661 = vmatprep.subr.mxu0 0.0
    %662 = vmatpush1.msra.mxu0 0.0
    %663 = vmatprep.subr.mxu0 0.0
    %664 = vmatpush1.msra.mxu0 0.0
    %665 = vmatprep.subr.mxu0 0.0
    %666 = vmatpush1.msra.mxu0 0.0
    %667 = vmatprep.subr.mxu0 0.0
    %668 = vmatpush1.msra.mxu0 0.0
    %669 = vmatprep.subr.mxu0 0.0
    %670 = vmatpush1.msra.mxu0 0.0
    %671 = vmatprep.subr.mxu0 0.0
    %672 = vmatpush1.msra.mxu0 0.0
    %673 = vmatprep.subr.mxu0 0.0
    %674 = vmatpush1.msra.mxu0 0.0
    %675 = vmatprep.subr.mxu0 0.0
    %676 = vmatpush1.msra.mxu0 0.0
    %677 = vmatprep.subr.mxu0 0.0
    %678 = vmatpush1.msra.mxu0 0.0
    %679 = vmatprep.subr.mxu0 0.0
    %680 = vmatpush1.msra.mxu0 0.0
    %681 = vmatprep.subr.mxu0 0.0
    %682 = vmatpush1.msra.mxu0 0.0
    %683 = vmatprep.subr.mxu0 0.0
    %684 = vmatpush1.msra.mxu0 0.0
    %685 = vmatprep.subr.mxu0 0.0
    %686 = vmatpush1.msra.mxu0 0.0
    %687 = vmatprep.subr.mxu0 0.0
    %688 = vmatpush1.msra.mxu0 0.0
    %689 = vmatprep.subr.mxu0 0.0
    %690 = vmatpush1.msra.mxu0 0.0
    %691 = vmatprep.subr.mxu0 0.0
    %692 = vmatpush1.msra.mxu0 0.0
    %693 = vmatprep.subr.mxu0 0.0
    %694 = vmatpush1.msra.mxu0 0.0
    %695 = vmatprep.subr.mxu0 0.0
    %696 = vmatpush1.msra.mxu0 0.0
    %697 = vmatprep.subr.mxu0 0.0
    %698 = vmatpush1.msra.mxu0 0.0
    %699 = vmatprep.subr.mxu0 0.0
    %700 = vmatpush1.msra.mxu0 0.0
    %701 = vmatprep.subr.mxu0 0.0
    %702 = vmatpush1.msra.mxu0 0.0
    %703 = vmatprep.subr.mxu0 0.0
    %704 = vmatpush1.msra.mxu0 0.0
    %705 = vmatprep.subr.mxu0 0.0
    %706 = vmatpush1.msra.mxu0 0.0
    %707 = vmatprep.subr.mxu0 0.0
    %708 = vmatpush1.msra.mxu0 0.0
    %709 = vmatprep.subr.mxu0 0.0
    %710 = vmatpush1.msra.mxu0 0.0
    %711 = vmatprep.subr.mxu0 0.0
    %712 = vmatpush1.msra.mxu0 0.0
    %713 = vmatprep.subr.mxu0 0.0
    %714 = vmatpush1.msra.mxu0 0.0
    %715 = vmatprep.subr.mxu0 0.0
    %716 = vmatpush1.msra.mxu0 0.0
    %717 = vmatprep.mubr.f32.mxu0 0.0
    %718 = vmatmul.mubr.f32.gmra.mrb[0].mxu0 %v651
    %v719 = vpop.f32.mrb[0].mxu0
    %v720 = vadd.f32 0.0, %v719
    %v721 = vpop.f32.mrb[0].mxu0
    %722 = vdwg.mxu0
    %v724 = vrot.slane %v720, 3
    %v726 = vadd.f32 %v122, %v724
    %v727 = vmul.f32 %v726, %v130
    %v728 = vtanh.pop %v727
    %v729 = vmul.f32 %v728, 0.5
    %v730 = vadd.f32 %v729, 0.5
    %v731 = vsel %vm129, %v728, %v730
    %v733 = vrot.slane %v640, 7
    %v735 = vmul.f32 %v731, %v733
    %737 = vrot.lane.b32.xlu0 %v731, 64
    %v738 = vpop.permute.xlu0 %737
    %v740 = vmul.f32 %v731, %v738
    %742 = vrot.lane.b32.xlu0 %v740, 32
    %v743 = vpop.permute.xlu0 %742
    %v745 = vadd.f32 %v735, %v743
    %v746 = vtanh.pop %v745
    %748 = vrot.lane.b32.xlu0 %v746, 64
    %v749 = vpop.permute.xlu0 %748
    %v751 = vmul.f32 %v731, %v749
    %v753 = vrot.slane %v751, 5
    %754 = vrot.lane.b32.xlu0 %v753, 32
    %v755 = vpop.permute.xlu0 %754
    %v756 = vsel %vm131, %v755, 0
    %758 = vmatprep.subr.mxu0 0.0
    %759 = vmatpush1.msra.mxu0 %v41
    %760 = vmatprep.subr.mxu0 0.0
    %761 = vmatpush1.msra.mxu0 %v42
    %762 = vmatprep.subr.mxu0 0.0
    %763 = vmatpush1.msra.mxu0 %v43
    %764 = vmatprep.subr.mxu0 0.0
    %765 = vmatpush1.msra.mxu0 %v44
    %766 = vmatprep.subr.mxu0 0.0
    %767 = vmatpush1.msra.mxu0 0.0
    %768 = vmatprep.subr.mxu0 0.0
    %769 = vmatpush1.msra.mxu0 0.0
    %770 = vmatprep.subr.mxu0 0.0
    %771 = vmatpush1.msra.mxu0 0.0
    %772 = vmatprep.subr.mxu0 0.0
    %773 = vmatpush1.msra.mxu0 0.0
    %774 = vmatprep.subr.mxu0 0.0
    %775 = vmatpush1.msra.mxu0 0.0
    %776 = vmatprep.subr.mxu0 0.0
    %777 = vmatpush1.msra.mxu0 0.0
    %778 = vmatprep.subr.mxu0 0.0
    %779 = vmatpush1.msra.mxu0 0.0
    %780 = vmatprep.subr.mxu0 0.0
    %781 = vmatpush1.msra.mxu0 0.0
    %782 = vmatprep.subr.mxu0 0.0
    %783 = vmatpush1.msra.mxu0 0.0
    %784 = vmatprep.subr.mxu0 0.0
    %785 = vmatpush1.msra.mxu0 0.0
    %786 = vmatprep.subr.mxu0 0.0
    %787 = vmatpush1.msra.mxu0 0.0
    %788 = vmatprep.subr.mxu0 0.0
    %789 = vmatpush1.msra.mxu0 0.0
    %790 = vmatprep.subr.mxu0 0.0
    %791 = vmatpush1.msra.mxu0 0.0
    %792 = vmatprep.subr.mxu0 0.0
    %793 = vmatpush1.msra.mxu0 0.0
    %794 = vmatprep.subr.mxu0 0.0
    %795 = vmatpush1.msra.mxu0 0.0
    %796 = vmatprep.subr.mxu0 0.0
    %797 = vmatpush1.msra.mxu0 0.0
    %798 = vmatprep.subr.mxu0 0.0
    %799 = vmatpush1.msra.mxu0 0.0
    %800 = vmatprep.subr.mxu0 0.0
    %801 = vmatpush1.msra.mxu0 0.0
    %802 = vmatprep.subr.mxu0 0.0
    %803 = vmatpush1.msra.mxu0 0.0
    %804 = vmatprep.subr.mxu0 0.0
    %805 = vmatpush1.msra.mxu0 0.0
    %806 = vmatprep.subr.mxu0 0.0
    %807 = vmatpush1.msra.mxu0 0.0
    %808 = vmatprep.subr.mxu0 0.0
    %809 = vmatpush1.msra.mxu0 0.0
    %810 = vmatprep.subr.mxu0 0.0
    %811 = vmatpush1.msra.mxu0 0.0
    %812 = vmatprep.subr.mxu0 0.0
    %813 = vmatpush1.msra.mxu0 0.0
    %814 = vmatprep.subr.mxu0 0.0
    %815 = vmatpush1.msra.mxu0 0.0
    %816 = vmatprep.subr.mxu0 0.0
    %817 = vmatpush1.msra.mxu0 0.0
    %818 = vmatprep.subr.mxu0 0.0
    %819 = vmatpush1.msra.mxu0 0.0
    %820 = vmatprep.subr.mxu0 0.0
    %821 = vmatpush1.msra.mxu0 0.0
    %822 = vmatprep.mubr.f32.mxu0 0.0
    %823 = vmatmul.mubr.f32.gmra.mrb[0].mxu0 %v756
    %v824 = vpop.f32.mrb[0].mxu0
    %v825 = vadd.f32 0.0, %v824
    %v826 = vpop.f32.mrb[0].mxu0
    %827 = vdwg.mxu0
    %v829 = vrot.slane %v825, 2
    %v831 = vadd.f32 %v122, %v829
    %v832 = vmul.f32 %v831, %v130
    %v833 = vtanh.pop %v832
    %v834 = vmul.f32 %v833, 0.5
    %v835 = vadd.f32 %v834, 0.5
    %v836 = vsel %vm129, %v833, %v835
    %v838 = vrot.slane %v745, 7
    %v840 = vmul.f32 %v836, %v838
    %842 = vrot.lane.b32.xlu0 %v836, 64
    %v843 = vpop.permute.xlu0 %842
    %v845 = vmul.f32 %v836, %v843
    %847 = vrot.lane.b32.xlu0 %v845, 32
    %v848 = vpop.permute.xlu0 %847
    %v850 = vadd.f32 %v840, %v848
    %v851 = vtanh.pop %v850
    %853 = vrot.lane.b32.xlu0 %v851, 64
    %v854 = vpop.permute.xlu0 %853
    %v856 = vmul.f32 %v836, %v854
    %v858 = vrot.slane %v856, 6
    %859 = vrot.lane.b32.xlu0 %v858, 32
    %v860 = vpop.permute.xlu0 %859
    %v861 = vsel %vm131, %v860, 0
    %863 = vmatprep.subr.mxu0 0.0
    %864 = vmatpush1.msra.mxu0 %v41
    %865 = vmatprep.subr.mxu0 0.0
    %866 = vmatpush1.msra.mxu0 %v42
    %867 = vmatprep.subr.mxu0 0.0
    %868 = vmatpush1.msra.mxu0 %v43
    %869 = vmatprep.subr.mxu0 0.0
    %870 = vmatpush1.msra.mxu0 %v44
    %871 = vmatprep.subr.mxu0 0.0
    %872 = vmatpush1.msra.mxu0 0.0
    %873 = vmatprep.subr.mxu0 0.0
    %874 = vmatpush1.msra.mxu0 0.0
    %875 = vmatprep.subr.mxu0 0.0
    %876 = vmatpush1.msra.mxu0 0.0
    %877 = vmatprep.subr.mxu0 0.0
    %878 = vmatpush1.msra.mxu0 0.0
    %879 = vmatprep.subr.mxu0 0.0
    %880 = vmatpush1.msra.mxu0 0.0
    %881 = vmatprep.subr.mxu0 0.0
    %882 = vmatpush1.msra.mxu0 0.0
    %883 = vmatprep.subr.mxu0 0.0
    %884 = vmatpush1.msra.mxu0 0.0
    %885 = vmatprep.subr.mxu0 0.0
    %886 = vmatpush1.msra.mxu0 0.0
    %887 = vmatprep.subr.mxu0 0.0
    %888 = vmatpush1.msra.mxu0 0.0
    %889 = vmatprep.subr.mxu0 0.0
    %890 = vmatpush1.msra.mxu0 0.0
    %891 = vmatprep.subr.mxu0 0.0
    %892 = vmatpush1.msra.mxu0 0.0
    %893 = vmatprep.subr.mxu0 0.0
    %894 = vmatpush1.msra.mxu0 0.0
    %895 = vmatprep.subr.mxu0 0.0
    %896 = vmatpush1.msra.mxu0 0.0
    %897 = vmatprep.subr.mxu0 0.0
    %898 = vmatpush1.msra.mxu0 0.0
    %899 = vmatprep.subr.mxu0 0.0
    %900 = vmatpush1.msra.mxu0 0.0
    %901 = vmatprep.subr.mxu0 0.0
    %902 = vmatpush1.msra.mxu0 0.0
    %903 = vmatprep.subr.mxu0 0.0
    %904 = vmatpush1.msra.mxu0 0.0
    %905 = vmatprep.subr.mxu0 0.0
    %906 = vmatpush1.msra.mxu0 0.0
    %907 = vmatprep.subr.mxu0 0.0
    %908 = vmatpush1.msra.mxu0 0.0
    %909 = vmatprep.subr.mxu0 0.0
    %910 = vmatpush1.msra.mxu0 0.0
    %911 = vmatprep.subr.mxu0 0.0
    %912 = vmatpush1.msra.mxu0 0.0
    %913 = vmatprep.subr.mxu0 0.0
    %914 = vmatpush1.msra.mxu0 0.0
    %915 = vmatprep.subr.mxu0 0.0
    %916 = vmatpush1.msra.mxu0 0.0
    %917 = vmatprep.subr.mxu0 0.0
    %918 = vmatpush1.msra.mxu0 0.0
    %919 = vmatprep.subr.mxu0 0.0
    %920 = vmatpush1.msra.mxu0 0.0
    %921 = vmatprep.subr.mxu0 0.0
    %922 = vmatpush1.msra.mxu0 0.0
    %923 = vmatprep.subr.mxu0 0.0
    %924 = vmatpush1.msra.mxu0 0.0
    %925 = vmatprep.subr.mxu0 0.0
    %926 = vmatpush1.msra.mxu0 0.0
    %927 = vmatprep.mubr.f32.mxu0 0.0
    %928 = vmatmul.mubr.f32.gmra.mrb[0].mxu0 %v861
    %v929 = vpop.f32.mrb[0].mxu0
    %v930 = vadd.f32 0.0, %v929
    %v931 = vpop.f32.mrb[0].mxu0
    %932 = vdwg.mxu0
    %v934 = vrot.slane %v930, 1
    %v936 = vadd.f32 %v122, %v934
    %v937 = vmul.f32 %v936, %v130
    %v938 = vtanh.pop %v937
    %v939 = vmul.f32 %v938, 0.5
    %v940 = vadd.f32 %v939, 0.5
    %v941 = vsel %vm129, %v938, %v940
    %v943 = vrot.slane %v850, 7
    %v945 = vmul.f32 %v941, %v943
    %947 = vrot.lane.b32.xlu0 %v941, 64
    %v948 = vpop.permute.xlu0 %947
    %v950 = vmul.f32 %v941, %v948
    %952 = vrot.lane.b32.xlu0 %v950, 32
    %v953 = vpop.permute.xlu0 %952
    %v955 = vadd.f32 %v945, %v953
    %v956 = vtanh.pop %v955
    %958 = vrot.lane.b32.xlu0 %v956, 64
    %v959 = vpop.permute.xlu0 %958
    %v961 = vmul.f32 %v941, %v959
    %vm962 = vcmask 1040384
    %v963 = vsel %vm962, %v227, %v331
    %vm964 = vcmask 1041408
    %v965 = vsel %vm964, %v963, %v436
    %vm966 = vcmask 1042432
    %v967 = vsel %vm966, %v965, %v541
    %vm968 = vcmask 1043456
    %v969 = vsel %vm968, %v967, %v646
    %vm970 = vcmask 1044480
    %v971 = vsel %vm970, %v969, %v751
    %vm972 = vcmask 1045504
    %v973 = vsel %vm972, %v971, %v856
    %vm974 = vcmask 1046528
    %v975 = vsel %vm974, %v973, %v961
    %v976 = vld [vmem:[%s2] sm:$0x1]
    %v977 = vld [vmem:[%s2 + $0x1] sm:$0x1]
    %v978 = vlaneseq
    %v979 = vshrl.u32 %v978, 7
    %v980 = vsub.s32 0, %v979
    %v981 = vrot.slane %v976, %v980
    %983 = vrot.lane.b32.xlu0 %v981, 96
    %v984 = vpop.permute.xlu0 %983
    %v986 = vmul.f32 %v975, %v984
    %988 = vrot.lane.b32.xlu0 %v986, 32
    %v989 = vpop.permute.xlu0 %988
    %v991 = vsel %vm131, %v989, 0.0
    %992 = vadd.xlane.f32.xlu0 %v991
    %v993 = vpop.xlane.xlu0 %992
    %v994 = vlaneseq
    %v995 = vshrl.u32 %v994, 7
    %v996 = vsub.s32 0, %v995
    %v997 = vrot.slane %v977, %v996
    %v998 = vadd.f32 %v993, %v997
    %vm999 = vcmask 7168
    %1000 = vst.msk [vmem:[%s3] sm:$0xff] %vm999, %v998
    // Predicated region
    $region22: #{tpu_custom_call.1} parent=1 // pred_check
      _
    $region23: #{tpu_custom_call.1} parent=1 // pred_check_branch
      %1002 = sbr.rel (0) target = $region25
    $region24: #{tpu_custom_call.1} parent=1 // pred_region
      _
    $region25: #{tpu_custom_call.1} parent=1 // pred_fallthru
      _
    // Predicated region
    $region26: #{tpu_custom_call.1} parent=1 // pred_check
      _
    $region27: #{tpu_custom_call.1} parent=1 // pred_check_branch
      %1004 = sbr.rel (0) target = $region29
    $region28: #{tpu_custom_call.1} parent=1 // pred_region
      _
    $region29: #{tpu_custom_call.1} parent=1 // pred_fallthru
      _
    %1005 = vsyncpa [#allocation3], 1
    %1006 = vsyncpa [#allocation5], 1

</llo_original>
